<compile_context>
chip_gen: v6e
topology: v6e:2x2x1
jax: 0.10.0
libtpu: 0.0.40
codegen_flags: <defaults>
</compile_context>

<pallas_src>
import math

import jax
import jax.numpy as jnp
from jax import lax
from jax.experimental import pallas as pl
from jax.experimental.pallas import tpu as pltpu

DIM = 32          # `dim` in the PyTorch script
HEADS = 32        # global `heads` used inside forward (required for broadcast to work)
SCALE = math.sqrt(DIM)   # scale_factor = np.sqrt(dim); the module MULTIPLIES by it
DROPOUT_P = 0.0   # dropout with p=0.0 is the identity (eval-equivalent)
# TODO(synk): dropout is treated as identity (p=0.0 / eval mode); no RNG path emitted.


def attention_kernel(x_ref, c_ref,
                     wq_t_ref, bq_ref,
                     wkv_t_ref, bkv_ref,
                     wo_t_ref, bo_ref,
                     o_ref):
    x = x_ref[...]          # (Nq, D) flattened x tokens
    c = c_ref[...]          # (Nk, D) flattened context tokens (Nk == HEADS)

    # Q projection: weights already transposed in the wrapper -> plain x @ Wq_t
    q = jnp.dot(x, wq_t_ref[...], preferred_element_type=jnp.float32) + bq_ref[...]

    # Fused K/V projection: single (Nk, D) @ (D, 2D) matmul, then lane slices.
    kv = jnp.dot(c, wkv_t_ref[...], preferred_element_type=jnp.float32) + bkv_ref[...]
    k = kv[:, :DIM]         # (Nk, D)
    v = kv[:, DIM:]         # (Nk, D)

    # q @ k^T without materializing k.T: contract feature dims directly on MXU.
    qk = lax.dot_general(q, k, (((1,), (1,)), ((), ())),
                         preferred_element_type=jnp.float32) * SCALE   # (Nq, Nk)

    # softmax over last dim (numerically stable, matches torch.softmax);
    # reciprocal goes to the EUP slot instead of a VALU divide.
    m = jnp.max(qk, axis=-1, keepdims=True)
    e = jnp.exp(qk - m)
    inv_den = pl.reciprocal(jnp.sum(e, axis=-1, keepdims=True), approx=True)
    p = e * inv_den

    # dropout with p=0.0 is identity
    att = jnp.dot(p, v, preferred_element_type=jnp.float32)            # (Nq, D)

    # output projection (pre-transposed weight)
    o_ref[...] = (jnp.dot(att, wo_t_ref[...], preferred_element_type=jnp.float32)
                  + bo_ref[...])


def model_forward(x, context, params):
    """x: (B, S, DIM), context: (Bc, Sc, DIM). Returns ((B*S)//HEADS, HEADS, DIM)."""
    wq, bq, wk, bk, wv, bv, wo, bo = params
    B, S, D = x.shape
    Bc, Sc, Dc = context.shape
    assert D == DIM and Dc == DIM
    nq = B * S
    nk = Bc * Sc
    assert nq % HEADS == 0, "q token count must be divisible by heads"
    assert nk == HEADS, "context must collapse to a broadcastable batch of 1"

    x2 = x.reshape(nq, D).astype(jnp.float32)
    c2 = context.reshape(nk, D).astype(jnp.float32)

    # Free layout plumbing in the wrapper: pre-transpose weights, fuse K/V params.
    wq_t = wq.T                                         # (D, D)
    wkv_t = jnp.concatenate([wk.T, wv.T], axis=1)       # (D, 2D)
    bkv = jnp.concatenate([bk, bv]).reshape(1, 2 * D)   # (1, 2D)
    wo_t = wo.T                                         # (D, D)

    def full_spec(shape):
        return pl.BlockSpec(shape, lambda i, s=len(shape): (0,) * s)

    out = pl.pallas_call(
        attention_kernel,
        out_shape=jax.ShapeDtypeStruct((nq, D), jnp.float32),
        grid=(1,),
        in_specs=[
            full_spec((nq, D)), full_spec((nk, D)),
            full_spec((D, D)), full_spec((1, D)),
            full_spec((D, 2 * D)), full_spec((1, 2 * D)),
            full_spec((D, D)), full_spec((1, D)),
        ],
        out_specs=full_spec((nq, D)),
        compiler_params=pltpu.CompilerParams(
            dimension_semantics=("arbitrary",)),
    )(x2, c2,
      wq_t, bq.reshape(1, D),
      wkv_t, bkv,
      wo_t, bo.reshape(1, D))

    return out.reshape(nq // HEADS, HEADS, D)


def init_params(key):
    """Deterministic Linear params (torch-style uniform(-1/sqrt(in), 1/sqrt(in)))."""
    ks = jax.random.split(key, 8)
    bound = 1.0 / math.sqrt(DIM)
    def lin(kw, kb):
        w = jax.random.uniform(kw, (DIM, DIM), jnp.float32, -bound, bound)
        b = jax.random.uniform(kb, (DIM,), jnp.float32, -bound, bound)
        return w, b
    wq, bq = lin(ks[0], ks[1])
    wk, bk = lin(ks[2], ks[3])
    wv, bv = lin(ks[4], ks[5])
    wo, bo = lin(ks[6], ks[7])
    return (wq, bq, wk, bk, wv, bv, wo, bo)


if __name__ == "__main__":
    key = jax.random.PRNGKey(0)
    k_x, k_c, k_p = jax.random.split(key, 3)

    x = jax.random.normal(k_x, (8, 8, DIM), jnp.float32)        # like torch.randn(8, 8, dim)
    context = jax.random.normal(k_c, (8, 4, DIM), jnp.float32)  # like torch.randn(8, 4, dim_context)
    params = init_params(k_p)

    y = model_forward(x, context, params)
    jax.block_until_ready(y)

    # sanity: reference in plain JAX, same math
    x2 = x.reshape(-1, DIM); c2 = context.reshape(-1, DIM)
    wq, bq, wk, bk, wv, bv, wo, bo = params
    q = x2 @ wq.T + bq; k = c2 @ wk.T + bk; v = c2 @ wv.T + bv
    qk = (q @ k.T) * SCALE
    p = jax.nn.softmax(qk, axis=-1)
    ref = ((p @ v) @ wo.T + bo).reshape(y.shape)
    assert y.shape == (x.shape[0] * x.shape[1] // HEADS, HEADS, DIM)
    # tolerance slightly relaxed for the approximate (EUP) reciprocal in softmax
    assert jnp.allclose(y, ref, atol=2e-3, rtol=2e-3)

    print("KERNEL_OK")
</pallas_src>

<mosaic_0001>
module attributes {stable_mosaic.version = 11 : i64} {
  func.func @attention_kernel(%arg0: i32, %arg1: memref<64x32xf32, #tpu.memory_space<vmem>>, %arg2: memref<32x32xf32, #tpu.memory_space<vmem>>, %arg3: memref<32x32xf32, #tpu.memory_space<vmem>>, %arg4: memref<1x32xf32, #tpu.memory_space<vmem>>, %arg5: memref<32x64xf32, #tpu.memory_space<vmem>>, %arg6: memref<1x64xf32, #tpu.memory_space<vmem>>, %arg7: memref<32x32xf32, #tpu.memory_space<vmem>>, %arg8: memref<1x32xf32, #tpu.memory_space<vmem>>, %arg9: memref<64x32xf32, #tpu.memory_space<vmem>>) attributes {dimension_semantics = [#tpu.dimension_semantics<arbitrary>], iteration_bounds = array<i64: 1>, scalar_prefetch = 0 : i64, scratch_operands = 0 : i64, tpu.core_type = #tpu.core_type<tc>, window_params = [{pipeline_mode = #tpu.pipeline_mode<synchronous>, transform_indices = @transform_0, window_bounds = array<i64: 64, 32>}, {pipeline_mode = #tpu.pipeline_mode<synchronous>, transform_indices = @transform_1, window_bounds = array<i64: 32, 32>}, {pipeline_mode = #tpu.pipeline_mode<synchronous>, transform_indices = @transform_2, window_bounds = array<i64: 32, 32>}, {pipeline_mode = #tpu.pipeline_mode<synchronous>, transform_indices = @transform_3, window_bounds = array<i64: 1, 32>}, {pipeline_mode = #tpu.pipeline_mode<synchronous>, transform_indices = @transform_4, window_bounds = array<i64: 32, 64>}, {pipeline_mode = #tpu.pipeline_mode<synchronous>, transform_indices = @transform_5, window_bounds = array<i64: 1, 64>}, {pipeline_mode = #tpu.pipeline_mode<synchronous>, transform_indices = @transform_6, window_bounds = array<i64: 32, 32>}, {pipeline_mode = #tpu.pipeline_mode<synchronous>, transform_indices = @transform_7, window_bounds = array<i64: 1, 32>}, {pipeline_mode = #tpu.pipeline_mode<synchronous>, transform_indices = @transform_8, window_bounds = array<i64: 64, 32>}]} {
    %c0 = arith.constant 0 : index
    %c0_0 = arith.constant 0 : index
    %0 = vector.load %arg1[%c0, %c0_0] : memref<64x32xf32, #tpu.memory_space<vmem>>, vector<64x32xf32>
    %c0_1 = arith.constant 0 : index
    %c0_2 = arith.constant 0 : index
    %1 = vector.load %arg2[%c0_1, %c0_2] : memref<32x32xf32, #tpu.memory_space<vmem>>, vector<32x32xf32>
    %c0_3 = arith.constant 0 : index
    %c0_4 = arith.constant 0 : index
    %2 = vector.load %arg3[%c0_3, %c0_4] : memref<32x32xf32, #tpu.memory_space<vmem>>, vector<32x32xf32>
    %cst = arith.constant dense<0.000000e+00> : vector<64x32xf32>
    %3 = tpu.matmul %0, %2, %cst {dimension_numbers = #tpu.dot_dimension_numbers<[1], [0], [0], [1], [0, 0, 1, 1], [], []>} : vector<64x32xf32>, vector<32x32xf32>, vector<64x32xf32> -> vector<64x32xf32>
    %c0_5 = arith.constant 0 : index
    %c0_6 = arith.constant 0 : index
    %4 = vector.load %arg4[%c0_5, %c0_6] : memref<1x32xf32, #tpu.memory_space<vmem>>, vector<1x32xf32>
    %5 = vector.broadcast %4 : vector<1x32xf32> to vector<64x32xf32>
    %6 = arith.addf %3, %5 : vector<64x32xf32>
    %c0_7 = arith.constant 0 : index
    %c0_8 = arith.constant 0 : index
    %7 = vector.load %arg5[%c0_7, %c0_8] : memref<32x64xf32, #tpu.memory_space<vmem>>, vector<32x64xf32>
    %cst_9 = arith.constant dense<0.000000e+00> : vector<32x64xf32>
    %8 = tpu.matmul %1, %7, %cst_9 {dimension_numbers = #tpu.dot_dimension_numbers<[1], [0], [0], [1], [0, 0, 1, 1], [], []>} : vector<32x32xf32>, vector<32x64xf32>, vector<32x64xf32> -> vector<32x64xf32>
    %c0_10 = arith.constant 0 : index
    %c0_11 = arith.constant 0 : index
    %9 = vector.load %arg6[%c0_10, %c0_11] : memref<1x64xf32, #tpu.memory_space<vmem>>, vector<1x64xf32>
    %10 = vector.broadcast %9 : vector<1x64xf32> to vector<32x64xf32>
    %11 = arith.addf %8, %10 : vector<32x64xf32>
    %12 = vector.extract_strided_slice %11 {offsets = [0, 0], sizes = [32, 32], strides = [1, 1]} : vector<32x64xf32> to vector<32x32xf32>
    %13 = vector.extract_strided_slice %11 {offsets = [0, 32], sizes = [32, 32], strides = [1, 1]} : vector<32x64xf32> to vector<32x32xf32>
    %cst_12 = arith.constant dense<0.000000e+00> : vector<64x32xf32>
    %14 = tpu.matmul %6, %12, %cst_12 {dimension_numbers = #tpu.dot_dimension_numbers<[1], [1], [0], [0], [0, 0, 1, 0], [], []>} : vector<64x32xf32>, vector<32x32xf32>, vector<64x32xf32> -> vector<64x32xf32>
    %cst_13 = arith.constant 5.65685415 : f32
    %15 = vector.broadcast %cst_13 : f32 to vector<64x32xf32>
    %16 = arith.mulf %14, %15 : vector<64x32xf32>
    %cst_14 = arith.constant dense<0xFF800000> : vector<64xf32>
    %17 = vector.multi_reduction <maximumf>, %16, %cst_14 [1] : vector<64x32xf32> to vector<64xf32>
    %18 = vector.shape_cast %17 : vector<64xf32> to vector<64x1xf32>
    %19 = vector.broadcast %18 : vector<64x1xf32> to vector<64x32xf32>
    %20 = arith.subf %16, %19 : vector<64x32xf32>
    %21 = math.exp %20 : vector<64x32xf32>
    %cst_15 = arith.constant dense<0.000000e+00> : vector<64xf32>
    %22 = vector.multi_reduction <add>, %21, %cst_15 [1] : vector<64x32xf32> to vector<64xf32>
    %23 = vector.shape_cast %22 : vector<64xf32> to vector<64x1xf32>
    %24 = tpu.reciprocal %23 {approx = true} : vector<64x1xf32> -> vector<64x1xf32>
    %25 = vector.broadcast %24 : vector<64x1xf32> to vector<64x32xf32>
    %26 = arith.mulf %21, %25 : vector<64x32xf32>
    %cst_16 = arith.constant dense<0.000000e+00> : vector<64x32xf32>
    %27 = tpu.matmul %26, %13, %cst_16 {dimension_numbers = #tpu.dot_dimension_numbers<[1], [0], [0], [1], [0, 0, 1, 1], [], []>} : vector<64x32xf32>, vector<32x32xf32>, vector<64x32xf32> -> vector<64x32xf32>
    %c0_17 = arith.constant 0 : index
    %c0_18 = arith.constant 0 : index
    %28 = vector.load %arg7[%c0_17, %c0_18] : memref<32x32xf32, #tpu.memory_space<vmem>>, vector<32x32xf32>
    %cst_19 = arith.constant dense<0.000000e+00> : vector<64x32xf32>
    %29 = tpu.matmul %27, %28, %cst_19 {dimension_numbers = #tpu.dot_dimension_numbers<[1], [0], [0], [1], [0, 0, 1, 1], [], []>} : vector<64x32xf32>, vector<32x32xf32>, vector<64x32xf32> -> vector<64x32xf32>
    %c0_20 = arith.constant 0 : index
    %c0_21 = arith.constant 0 : index
    %30 = vector.load %arg8[%c0_20, %c0_21] : memref<1x32xf32, #tpu.memory_space<vmem>>, vector<1x32xf32>
    %31 = vector.broadcast %30 : vector<1x32xf32> to vector<64x32xf32>
    %32 = arith.addf %29, %31 : vector<64x32xf32>
    %c0_22 = arith.constant 0 : index
    %c0_23 = arith.constant 0 : index
    %33 = vector.load %arg9[%c0_22, %c0_23] : memref<64x32xf32, #tpu.memory_space<vmem>>, vector<64x32xf32>
    tpu.vector_store %arg9[%c0_22, %c0_23], %32 {strides = array<i32>} : memref<64x32xf32, #tpu.memory_space<vmem>>, vector<64x32xf32>,
    return
  }
  func.func @transform_0(%arg0: i32) -> (i32, i32) {
    %c0_i32 = arith.constant 0 : i32
    %c0_i32_0 = arith.constant 0 : i32
    %c0_i32_1 = arith.constant 0 : i32
    return %c0_i32, %c0_i32_0 : i32, i32
  }
  func.func @transform_1(%arg0: i32) -> (i32, i32) {
    %c0_i32 = arith.constant 0 : i32
    %c0_i32_0 = arith.constant 0 : i32
    %c0_i32_1 = arith.constant 0 : i32
    return %c0_i32, %c0_i32_0 : i32, i32
  }
  func.func @transform_2(%arg0: i32) -> (i32, i32) {
    %c0_i32 = arith.constant 0 : i32
    %c0_i32_0 = arith.constant 0 : i32
    %c0_i32_1 = arith.constant 0 : i32
    return %c0_i32, %c0_i32_0 : i32, i32
  }
  func.func @transform_3(%arg0: i32) -> (i32, i32) {
    %c0_i32 = arith.constant 0 : i32
    %c0_i32_0 = arith.constant 0 : i32
    %c0_i32_1 = arith.constant 0 : i32
    return %c0_i32, %c0_i32_0 : i32, i32
  }
  func.func @transform_4(%arg0: i32) -> (i32, i32) {
    %c0_i32 = arith.constant 0 : i32
    %c0_i32_0 = arith.constant 0 : i32
    %c0_i32_1 = arith.constant 0 : i32
    return %c0_i32, %c0_i32_0 : i32, i32
  }
  func.func @transform_5(%arg0: i32) -> (i32, i32) {
    %c0_i32 = arith.constant 0 : i32
    %c0_i32_0 = arith.constant 0 : i32
    %c0_i32_1 = arith.constant 0 : i32
    return %c0_i32, %c0_i32_0 : i32, i32
  }
  func.func @transform_6(%arg0: i32) -> (i32, i32) {
    %c0_i32 = arith.constant 0 : i32
    %c0_i32_0 = arith.constant 0 : i32
    %c0_i32_1 = arith.constant 0 : i32
    return %c0_i32, %c0_i32_0 : i32, i32
  }
  func.func @transform_7(%arg0: i32) -> (i32, i32) {
    %c0_i32 = arith.constant 0 : i32
    %c0_i32_0 = arith.constant 0 : i32
    %c0_i32_1 = arith.constant 0 : i32
    return %c0_i32, %c0_i32_0 : i32, i32
  }
  func.func @transform_8(%arg0: i32) -> (i32, i32) {
    %c0_i32 = arith.constant 0 : i32
    %c0_i32_0 = arith.constant 0 : i32
    %c0_i32_1 = arith.constant 0 : i32
    return %c0_i32, %c0_i32_0 : i32, i32
  }
}

</mosaic_0001>

<llo_original>
// kernel: tpu_custom_call.1
$region0: #{tpu_custom_call.1}
  #allocation0 [shape = 'u32[]', space=smem, size = 0x4, offset = 0x4, fixed_abs, tag = 'smem constant byte address 0x4 - core index']
  #allocation1 [shape = 'u32[144,128]{1,0:T(1,128)}', space=vmem, size = 0x12000, scoped, tag = 'internal scratch']
  %s0 = inlined_call_operand.vmem [shape: f32[64,32], index: 0, kind: input, shape index: {}]
  %s1 = inlined_call_operand.vmem [shape: f32[32,32], index: 1, kind: input, shape index: {}]
  %s2 = inlined_call_operand.vmem [shape: f32[32,32], index: 2, kind: input, shape index: {}]
  %s3 = inlined_call_operand.vmem [shape: f32[1,32], index: 3, kind: input, shape index: {}]
  %s4 = inlined_call_operand.vmem [shape: f32[32,64], index: 4, kind: input, shape index: {}]
  %s5 = inlined_call_operand.vmem [shape: f32[1,64], index: 5, kind: input, shape index: {}]
  %s6 = inlined_call_operand.hbm [shape: f32[32,32], index: 6, kind: input, shape index: {}]
  %s7 = inlined_call_operand.vmem [shape: f32[1,32], index: 7, kind: input, shape index: {}]
  %s8 = inlined_call_operand.vmem [shape: f32[64,32], index: 8, kind: output, shape index: {}]
  %s9 = sld [smem:[#allocation0]]
  $region46: #{tpu_custom_call.1} parent=0
    _
  %s11 = ssub.s32 1, %s9
  %s12 = scalar_select 0, %s11, %s9
  $region1: #{tpu_custom_call.1} parent=0
    #allocation2 [shape = 'u8[16384]{0}', space=vmem, size = 0x4000, scoped, tag = 'input window, operand 6, single buffered']
    #allocation3 [shape = 's32[1]{0}', space=sflag, size = 0x4, scoped, tag = 'scoped memory for tpu_custom_call.1']
    %13 = vsyncpa [#allocation3], 0
    // Predicated region
    $region2: #{tpu_custom_call.1} parent=1 // pred_check
      _
    $region3: #{tpu_custom_call.1} parent=1 // pred_check_branch
      %15 = sbr.rel (0) target = $region5
    $region4: #{tpu_custom_call.1} parent=1 // pred_region
      _
    $region5: #{tpu_custom_call.1} parent=1 // pred_fallthru
      _
    // Predicated region
    $region6: #{tpu_custom_call.1} parent=1 // pred_check
      _
    $region7: #{tpu_custom_call.1} parent=1 // pred_check_branch
      %17 = sbr.rel (0) target = $region9
    $region8: #{tpu_custom_call.1} parent=1 // pred_region
      _
    $region9: #{tpu_custom_call.1} parent=1 // pred_fallthru
      _
    // Predicated region
    $region10: #{tpu_custom_call.1} parent=1 // pred_check
      _
    $region11: #{tpu_custom_call.1} parent=1 // pred_check_branch
      %19 = sbr.rel (0) target = $region13
    $region12: #{tpu_custom_call.1} parent=1 // pred_region
      _
    $region13: #{tpu_custom_call.1} parent=1 // pred_fallthru
      _
    // Predicated region
    $region14: #{tpu_custom_call.1} parent=1 // pred_check
      _
    $region15: #{tpu_custom_call.1} parent=1 // pred_check_branch
      %21 = sbr.rel (0) target = $region17
    $region16: #{tpu_custom_call.1} parent=1 // pred_region
      _
    $region17: #{tpu_custom_call.1} parent=1 // pred_fallthru
      _
    // Predicated region
    $region18: #{tpu_custom_call.1} parent=1 // pred_check
      _
    $region19: #{tpu_custom_call.1} parent=1 // pred_check_branch
      %23 = sbr.rel (0) target = $region21
    $region20: #{tpu_custom_call.1} parent=1 // pred_region
      _
    $region21: #{tpu_custom_call.1} parent=1 // pred_fallthru
      _
    // Predicated region
    $region22: #{tpu_custom_call.1} parent=1 // pred_check
      _
    $region23: #{tpu_custom_call.1} parent=1 // pred_check_branch
      %25 = sbr.rel (0) target = $region25
    $region24: #{tpu_custom_call.1} parent=1 // pred_region
      _
    $region25: #{tpu_custom_call.1} parent=1 // pred_fallthru
      _
    // Predicated region
    $region26: #{tpu_custom_call.1} parent=1 // pred_check
      _
    $region27: #{tpu_custom_call.1} parent=1 // pred_check_branch
      %27 = sbr.rel (0) target = $region29
    $region28: #{tpu_custom_call.1} parent=1 // pred_region
      %s29 = ssub.s32 512, 512
      %30 = vsyncadd [#allocation3], %s29
      %s31 = sshll.u32 [#allocation2], 4
      %s32 = int_to_ptr.vmem [resolvable:$true] %s31
      %37 = dma.hbm_to_vmem [thread:$0]  %s6, 512, %s32, [#allocation3], 128, 128, 8
    $region29: #{tpu_custom_call.1} parent=1 // pred_fallthru
      _
    // Predicated region
    $region30: #{tpu_custom_call.1} parent=1 // pred_check
      _
    $region31: #{tpu_custom_call.1} parent=1 // pred_check_branch
      %39 = sbr.rel (0) target = $region33
    $region32: #{tpu_custom_call.1} parent=1 // pred_region
      _
    $region33: #{tpu_custom_call.1} parent=1 // pred_fallthru
      _
    // Predicated region
    $region34: #{tpu_custom_call.1} parent=1 // pred_check
      _
    $region35: #{tpu_custom_call.1} parent=1 // pred_check_branch
      %41 = sbr.rel (0) target = $region37
    $region36: #{tpu_custom_call.1} parent=1 // pred_region
      %42 = dma.done [#allocation3], 512
    $region37: #{tpu_custom_call.1} parent=1 // pred_fallthru
      _
    %v43 = vld [vmem:[%s0] sm:$0xff]
    %v44 = vld [vmem:[%s0 + $0x8] sm:$0xff]
    %v45 = vld [vmem:[%s0 + $0x10] sm:$0xff]
    %v46 = vld [vmem:[%s0 + $0x18] sm:$0xff]
    %v47 = vld [vmem:[%s0 + $0x20] sm:$0xff]
    %v48 = vld [vmem:[%s0 + $0x28] sm:$0xff]
    %v49 = vld [vmem:[%s0 + $0x30] sm:$0xff]
    %v50 = vld [vmem:[%s0 + $0x38] sm:$0xff]
    %v51 = vld [vmem:[%s1] sm:$0xff]
    %v52 = vld [vmem:[%s1 + $0x8] sm:$0xff]
    %v53 = vld [vmem:[%s1 + $0x10] sm:$0xff]
    %v54 = vld [vmem:[%s1 + $0x18] sm:$0xff]
    %v55 = vld [vmem:[%s2] sm:$0xff]
    %v56 = vld [vmem:[%s2 + $0x8] sm:$0xff]
    %v57 = vld [vmem:[%s2 + $0x10] sm:$0xff]
    %v58 = vld [vmem:[%s2 + $0x18] sm:$0xff]
    %v59 = vld [vmem:[%s3] sm:$0x1]
    %v61 = vlaneseq
    %v62 = vshrl.u32 %v61, 7
    %v63 = vsub.s32 0, %v62
    %v64 = vrot.slane %v59, %v63
    %vm66 = vcmask 261120
    %v68 = vsel %vm66, %v43, 0
    %v71 = vsel %vm66, %v44, 0
    %v74 = vsel %vm66, %v45, 0
    %v77 = vsel %vm66, %v46, 0
    %v80 = vsel %vm66, %v47, 0
    %v83 = vsel %vm66, %v48, 0
    %v86 = vsel %vm66, %v49, 0
    %v89 = vsel %vm66, %v50, 0
    %91 = vmatprep.subr.mxu0 0.0
    %92 = vmatpush1.msra.mxu0 0.0
    %93 = vmatprep.subr.mxu0 0.0
    %94 = vmatpush1.msra.mxu0 0.0
    %95 = vmatprep.subr.mxu0 0.0
    %96 = vmatpush1.msra.mxu0 0.0
    %97 = vmatprep.subr.mxu0 0.0
    %98 = vmatpush1.msra.mxu0 0.0
    %99 = vmatprep.subr.mxu0 0.0
    %100 = vmatpush1.msra.mxu0 0.0
    %101 = vmatprep.subr.mxu0 0.0
    %102 = vmatpush1.msra.mxu0 0.0
    %103 = vmatprep.subr.mxu0 0.0
    %104 = vmatpush1.msra.mxu0 0.0
    %105 = vmatprep.subr.mxu0 0.0
    %106 = vmatpush1.msra.mxu0 0.0
    %107 = vmatprep.subr.mxu0 0.0
    %108 = vmatpush1.msra.mxu0 0.0
    %109 = vmatprep.subr.mxu0 0.0
    %110 = vmatpush1.msra.mxu0 0.0
    %111 = vmatprep.subr.mxu0 0.0
    %112 = vmatpush1.msra.mxu0 0.0
    %113 = vmatprep.subr.mxu0 0.0
    %114 = vmatpush1.msra.mxu0 0.0
    %115 = vmatprep.subr.mxu0 0.0
    %116 = vmatpush1.msra.mxu0 %v58
    %117 = vmatprep.subr.mxu0 0.0
    %118 = vmatpush1.msra.mxu0 %v57
    %119 = vmatprep.subr.mxu0 0.0
    %120 = vmatpush1.msra.mxu0 %v56
    %121 = vmatprep.subr.mxu0 0.0
    %122 = vmatpush1.msra.mxu0 %v55
    %123 = vmatprep.subr.mxu0 0.0
    %124 = vmatpush2.msra.mxu0 0.0
    %125 = vmatprep.subr.mxu0 0.0
    %126 = vmatpush2.msra.mxu0 0.0
    %127 = vmatprep.subr.mxu0 0.0
    %128 = vmatpush2.msra.mxu0 0.0
    %129 = vmatprep.subr.mxu0 0.0
    %130 = vmatpush2.msra.mxu0 0.0
    %131 = vmatprep.subr.mxu0 0.0
    %132 = vmatpush2.msra.mxu0 0.0
    %133 = vmatprep.subr.mxu0 0.0
    %134 = vmatpush2.msra.mxu0 0.0
    %135 = vmatprep.subr.mxu0 0.0
    %136 = vmatpush2.msra.mxu0 0.0
    %137 = vmatprep.subr.mxu0 0.0
    %138 = vmatpush2.msra.mxu0 0.0
    %139 = vmatprep.subr.mxu0 0.0
    %140 = vmatpush2.msra.mxu0 0.0
    %141 = vmatprep.subr.mxu0 0.0
    %142 = vmatpush2.msra.mxu0 0.0
    %143 = vmatprep.subr.mxu0 0.0
    %144 = vmatpush2.msra.mxu0 0.0
    %145 = vmatprep.subr.mxu0 0.0
    %146 = vmatpush2.msra.mxu0 0.0
    %147 = vmatprep.subr.mxu0 0.0
    %148 = vmatpush2.msra.mxu0 0.0
    %149 = vmatprep.subr.mxu0 0.0
    %150 = vmatpush2.msra.mxu0 0.0
    %151 = vmatprep.subr.mxu0 0.0
    %152 = vmatpush2.msra.mxu0 0.0
    %153 = vmatprep.subr.mxu0 0.0
    %154 = vmatpush2.msra.mxu0 0.0
    %155 = vmatprep.mubr.f32.mxu0 0.0
    %156 = vmatmul.mubr.f32.gmra.mxu0 %v68
    %v157 = vpop.f32.mrf.mxu0
    %v158 = vadd.f32 %v64, %v157
    %v159 = vpop.f32.mrf.mxu0
    %160 = vmatprep.mubr.f32.mxu0 0.0
    %161 = vmatmul.mubr.f32.gmra.mxu0 %v71
    %v162 = vpop.f32.mrf.mxu0
    %v163 = vadd.f32 %v64, %v162
    %v164 = vpop.f32.mrf.mxu0
    %165 = vmatprep.mubr.f32.mxu0 0.0
    %166 = vmatmul.mubr.f32.gmra.mxu0 %v74
    %v167 = vpop.f32.mrf.mxu0
    %v168 = vadd.f32 %v64, %v167
    %v169 = vpop.f32.mrf.mxu0
    %170 = vmatprep.mubr.f32.mxu0 0.0
    %171 = vmatmul.mubr.f32.gmra.mxu0 %v77
    %v172 = vpop.f32.mrf.mxu0
    %v173 = vadd.f32 %v64, %v172
    %v174 = vpop.f32.mrf.mxu0
    %175 = vmatprep.mubr.f32.mxu0 0.0
    %176 = vmatmul.mubr.f32.gmra.mxu0 %v80
    %v177 = vpop.f32.mrf.mxu0
    %v178 = vadd.f32 %v64, %v177
    %v179 = vpop.f32.mrf.mxu0
    %180 = vmatprep.mubr.f32.mxu0 0.0
    %181 = vmatmul.mubr.f32.gmra.mxu0 %v83
    %v182 = vpop.f32.mrf.mxu0
    %v183 = vadd.f32 %v64, %v182
    %v184 = vpop.f32.mrf.mxu0
    %185 = vmatprep.mubr.f32.mxu0 0.0
    %186 = vmatmul.mubr.f32.gmra.mxu0 %v86
    %v187 = vpop.f32.mrf.mxu0
    %v188 = vadd.f32 %v64, %v187
    %v189 = vpop.f32.mrf.mxu0
    %190 = vmatprep.mubr.f32.mxu0 0.0
    %191 = vmatmul.mubr.f32.gmra.mxu0 %v89
    %v192 = vpop.f32.mrf.mxu0
    %v193 = vadd.f32 %v64, %v192
    %v194 = vpop.f32.mrf.mxu0
    %195 = vdwg.mxu0
    %v196 = vld [vmem:[%s4] sm:$0xff]
    %v197 = vld [vmem:[%s4 + $0x8] sm:$0xff]
    %v198 = vld [vmem:[%s4 + $0x10] sm:$0xff]
    %v199 = vld [vmem:[%s4 + $0x18] sm:$0xff]
    %v200 = vld [vmem:[%s5] sm:$0x1]
    %v202 = vlaneseq
    %v203 = vshrl.u32 %v202, 7
    %v204 = vsub.s32 0, %v203
    %v205 = vrot.slane %v200, %v204
    %v208 = vsel %vm66, %v51, 0
    %v211 = vsel %vm66, %v52, 0
    %v214 = vsel %vm66, %v53, 0
    %v217 = vsel %vm66, %v54, 0
    %219 = vmatprep.subr.mxu0 0.0
    %220 = vmatpush1.msra.mxu0 0.0
    %221 = vmatprep.subr.mxu0 0.0
    %222 = vmatpush1.msra.mxu0 0.0
    %223 = vmatprep.subr.mxu0 0.0
    %224 = vmatpush1.msra.mxu0 0.0
    %225 = vmatprep.subr.mxu0 0.0
    %226 = vmatpush1.msra.mxu0 0.0
    %227 = vmatprep.subr.mxu0 0.0
    %228 = vmatpush1.msra.mxu0 0.0
    %229 = vmatprep.subr.mxu0 0.0
    %230 = vmatpush1.msra.mxu0 0.0
    %231 = vmatprep.subr.mxu0 0.0
    %232 = vmatpush1.msra.mxu0 0.0
    %233 = vmatprep.subr.mxu0 0.0
    %234 = vmatpush1.msra.mxu0 0.0
    %235 = vmatprep.subr.mxu0 0.0
    %236 = vmatpush1.msra.mxu0 0.0
    %237 = vmatprep.subr.mxu0 0.0
    %238 = vmatpush1.msra.mxu0 0.0
    %239 = vmatprep.subr.mxu0 0.0
    %240 = vmatpush1.msra.mxu0 0.0
    %241 = vmatprep.subr.mxu0 0.0
    %242 = vmatpush1.msra.mxu0 0.0
    %243 = vmatprep.subr.mxu0 0.0
    %244 = vmatpush1.msra.mxu0 %v199
    %245 = vmatprep.subr.mxu0 0.0
    %246 = vmatpush1.msra.mxu0 %v198
    %247 = vmatprep.subr.mxu0 0.0
    %248 = vmatpush1.msra.mxu0 %v197
    %249 = vmatprep.subr.mxu0 0.0
    %250 = vmatpush1.msra.mxu0 %v196
    %251 = vmatprep.subr.mxu0 0.0
    %252 = vmatpush2.msra.mxu0 0.0
    %253 = vmatprep.subr.mxu0 0.0
    %254 = vmatpush2.msra.mxu0 0.0
    %255 = vmatprep.subr.mxu0 0.0
    %256 = vmatpush2.msra.mxu0 0.0
    %257 = vmatprep.subr.mxu0 0.0
    %258 = vmatpush2.msra.mxu0 0.0
    %259 = vmatprep.subr.mxu0 0.0
    %260 = vmatpush2.msra.mxu0 0.0
    %261 = vmatprep.subr.mxu0 0.0
    %262 = vmatpush2.msra.mxu0 0.0
    %263 = vmatprep.subr.mxu0 0.0
    %264 = vmatpush2.msra.mxu0 0.0
    %265 = vmatprep.subr.mxu0 0.0
    %266 = vmatpush2.msra.mxu0 0.0
    %267 = vmatprep.subr.mxu0 0.0
    %268 = vmatpush2.msra.mxu0 0.0
    %269 = vmatprep.subr.mxu0 0.0
    %270 = vmatpush2.msra.mxu0 0.0
    %271 = vmatprep.subr.mxu0 0.0
    %272 = vmatpush2.msra.mxu0 0.0
    %273 = vmatprep.subr.mxu0 0.0
    %274 = vmatpush2.msra.mxu0 0.0
    %275 = vmatprep.subr.mxu0 0.0
    %276 = vmatpush2.msra.mxu0 0.0
    %277 = vmatprep.subr.mxu0 0.0
    %278 = vmatpush2.msra.mxu0 0.0
    %279 = vmatprep.subr.mxu0 0.0
    %280 = vmatpush2.msra.mxu0 0.0
    %281 = vmatprep.subr.mxu0 0.0
    %282 = vmatpush2.msra.mxu0 0.0
    %283 = vmatprep.mubr.f32.mxu0 0.0
    %284 = vmatmul.mubr.f32.gmra.mxu0 %v208
    %v285 = vpop.f32.mrf.mxu0
    %v286 = vadd.f32 %v205, %v285
    %v287 = vpop.f32.mrf.mxu0
    %288 = vmatprep.mubr.f32.mxu0 0.0
    %289 = vmatmul.mubr.f32.gmra.mxu0 %v211
    %v290 = vpop.f32.mrf.mxu0
    %v291 = vadd.f32 %v205, %v290
    %v292 = vpop.f32.mrf.mxu0
    %293 = vmatprep.mubr.f32.mxu0 0.0
    %294 = vmatmul.mubr.f32.gmra.mxu0 %v214
    %v295 = vpop.f32.mrf.mxu0
    %v296 = vadd.f32 %v205, %v295
    %v297 = vpop.f32.mrf.mxu0
    %298 = vmatprep.mubr.f32.mxu0 0.0
    %299 = vmatmul.mubr.f32.gmra.mxu0 %v217
    %v300 = vpop.f32.mrf.mxu0
    %v301 = vadd.f32 %v205, %v300
    %v302 = vpop.f32.mrf.mxu0
    %303 = vdwg.mxu0
    %v305 = vsel %vm66, %v158, 0
    %v308 = vsel %vm66, %v163, 0
    %v311 = vsel %vm66, %v168, 0
    %v314 = vsel %vm66, %v173, 0
    %v317 = vsel %vm66, %v178, 0
    %v320 = vsel %vm66, %v183, 0
    %v323 = vsel %vm66, %v188, 0
    %v326 = vsel %vm66, %v193, 0
    %v329 = vsel %vm66, %v286, 0
    %v332 = vsel %vm66, %v291, 0
    %v335 = vsel %vm66, %v296, 0
    %v338 = vsel %vm66, %v301, 0
    %340 = vmatprep.subr.mxu0 0.0
    %341 = vmatpush1.xpose.msra.mxu0 0.0
    %342 = vmatprep.subr.mxu0 0.0
    %343 = vmatpush1.xpose.msra.mxu0 0.0
    %344 = vmatprep.subr.mxu0 0.0
    %345 = vmatpush1.xpose.msra.mxu0 0.0
    %346 = vmatprep.subr.mxu0 0.0
    %347 = vmatpush1.xpose.msra.mxu0 0.0
    %348 = vmatprep.subr.mxu0 0.0
    %349 = vmatpush1.xpose.msra.mxu0 0.0
    %350 = vmatprep.subr.mxu0 0.0
    %351 = vmatpush1.xpose.msra.mxu0 0.0
    %352 = vmatprep.subr.mxu0 0.0
    %353 = vmatpush1.xpose.msra.mxu0 0.0
    %354 = vmatprep.subr.mxu0 0.0
    %355 = vmatpush1.xpose.msra.mxu0 0.0
    %356 = vmatprep.subr.mxu0 0.0
    %357 = vmatpush1.xpose.msra.mxu0 0.0
    %358 = vmatprep.subr.mxu0 0.0
    %359 = vmatpush1.xpose.msra.mxu0 0.0
    %360 = vmatprep.subr.mxu0 0.0
    %361 = vmatpush1.xpose.msra.mxu0 0.0
    %362 = vmatprep.subr.mxu0 0.0
    %363 = vmatpush1.xpose.msra.mxu0 0.0
    %364 = vmatprep.subr.mxu0 0.0
    %365 = vmatpush1.xpose.msra.mxu0 %v338
    %366 = vmatprep.subr.mxu0 0.0
    %367 = vmatpush1.xpose.msra.mxu0 %v335
    %368 = vmatprep.subr.mxu0 0.0
    %369 = vmatpush1.xpose.msra.mxu0 %v332
    %370 = vmatprep.subr.mxu0 0.0
    %371 = vmatpush1.xpose.msra.mxu0 %v329
    %372 = vmatprep.subr.mxu0 0.0
    %373 = vmatpush2.xpose.msra.mxu0 0.0
    %374 = vmatprep.subr.mxu0 0.0
    %375 = vmatpush2.xpose.msra.mxu0 0.0
    %376 = vmatprep.subr.mxu0 0.0
    %377 = vmatpush2.xpose.msra.mxu0 0.0
    %378 = vmatprep.subr.mxu0 0.0
    %379 = vmatpush2.xpose.msra.mxu0 0.0
    %380 = vmatprep.subr.mxu0 0.0
    %381 = vmatpush2.xpose.msra.mxu0 0.0
    %382 = vmatprep.subr.mxu0 0.0
    %383 = vmatpush2.xpose.msra.mxu0 0.0
    %384 = vmatprep.subr.mxu0 0.0
    %385 = vmatpush2.xpose.msra.mxu0 0.0
    %386 = vmatprep.subr.mxu0 0.0
    %387 = vmatpush2.xpose.msra.mxu0 0.0
    %388 = vmatprep.subr.mxu0 0.0
    %389 = vmatpush2.xpose.msra.mxu0 0.0
    %390 = vmatprep.subr.mxu0 0.0
    %391 = vmatpush2.xpose.msra.mxu0 0.0
    %392 = vmatprep.subr.mxu0 0.0
    %393 = vmatpush2.xpose.msra.mxu0 0.0
    %394 = vmatprep.subr.mxu0 0.0
    %395 = vmatpush2.xpose.msra.mxu0 0.0
    %396 = vmatprep.subr.mxu0 0.0
    %397 = vmatpush2.xpose.msra.mxu0 0.0
    %398 = vmatprep.subr.mxu0 0.0
    %399 = vmatpush2.xpose.msra.mxu0 0.0
    %400 = vmatprep.subr.mxu0 0.0
    %401 = vmatpush2.xpose.msra.mxu0 0.0
    %402 = vmatprep.subr.mxu0 0.0
    %403 = vmatpush2.xpose.msra.mxu0 0.0
    %404 = vmatprep.mubr.f32.mxu0 0.0
    %405 = vmatmul.mubr.f32.gmra.mxu0 %v305
    %v406 = vpop.f32.mrf.mxu0
    %v407 = vadd.f32 0.0, %v406
    %v408 = vpop.f32.mrf.mxu0
    %409 = vmatprep.mubr.f32.mxu0 0.0
    %410 = vmatmul.mubr.f32.gmra.mxu0 %v308
    %v411 = vpop.f32.mrf.mxu0
    %v412 = vadd.f32 0.0, %v411
    %v413 = vpop.f32.mrf.mxu0
    %414 = vmatprep.mubr.f32.mxu0 0.0
    %415 = vmatmul.mubr.f32.gmra.mxu0 %v311
    %v416 = vpop.f32.mrf.mxu0
    %v417 = vadd.f32 0.0, %v416
    %v418 = vpop.f32.mrf.mxu0
    %419 = vmatprep.mubr.f32.mxu0 0.0
    %420 = vmatmul.mubr.f32.gmra.mxu0 %v314
    %v421 = vpop.f32.mrf.mxu0
    %v422 = vadd.f32 0.0, %v421
    %v423 = vpop.f32.mrf.mxu0
    %424 = vmatprep.mubr.f32.mxu0 0.0
    %425 = vmatmul.mubr.f32.gmra.mxu0 %v317
    %v426 = vpop.f32.mrf.mxu0
    %v427 = vadd.f32 0.0, %v426
    %v428 = vpop.f32.mrf.mxu0
    %429 = vmatprep.mubr.f32.mxu0 0.0
    %430 = vmatmul.mubr.f32.gmra.mxu0 %v320
    %v431 = vpop.f32.mrf.mxu0
    %v432 = vadd.f32 0.0, %v431
    %v433 = vpop.f32.mrf.mxu0
    %434 = vmatprep.mubr.f32.mxu0 0.0
    %435 = vmatmul.mubr.f32.gmra.mxu0 %v323
    %v436 = vpop.f32.mrf.mxu0
    %v437 = vadd.f32 0.0, %v436
    %v438 = vpop.f32.mrf.mxu0
    %439 = vmatprep.mubr.f32.mxu0 0.0
    %440 = vmatmul.mubr.f32.gmra.mxu0 %v326
    %v441 = vpop.f32.mrf.mxu0
    %v442 = vadd.f32 0.0, %v441
    %v443 = vpop.f32.mrf.mxu0
    %444 = vdwg.mxu0
    %v445 = vmul.f32 %v407, 5.656854
    %v446 = vmul.f32 %v412, 5.656854
    %v447 = vmul.f32 %v417, 5.656854
    %v448 = vmul.f32 %v422, 5.656854
    %v449 = vmul.f32 %v427, 5.656854
    %v450 = vmul.f32 %v432, 5.656854
    %v451 = vmul.f32 %v437, 5.656854
    %v452 = vmul.f32 %v442, 5.656854
    %v453 = vsel %vm66, %v445, -inf
    %454 = vmax.xlane.f32.xlu0 %v453
    %v455 = vpop.xlane.xlu0 %454
    %v456 = vsel %vm66, %v446, -inf
    %457 = vmax.xlane.f32.xlu0 %v456
    %v458 = vpop.xlane.xlu0 %457
    %v459 = vsel %vm66, %v447, -inf
    %460 = vmax.xlane.f32.xlu0 %v459
    %v461 = vpop.xlane.xlu0 %460
    %v462 = vsel %vm66, %v448, -inf
    %463 = vmax.xlane.f32.xlu0 %v462
    %v464 = vpop.xlane.xlu0 %463
    %v465 = vsel %vm66, %v449, -inf
    %466 = vmax.xlane.f32.xlu0 %v465
    %v467 = vpop.xlane.xlu0 %466
    %v468 = vsel %vm66, %v450, -inf
    %469 = vmax.xlane.f32.xlu0 %v468
    %v470 = vpop.xlane.xlu0 %469
    %v471 = vsel %vm66, %v451, -inf
    %472 = vmax.xlane.f32.xlu0 %v471
    %v473 = vpop.xlane.xlu0 %472
    %v474 = vsel %vm66, %v452, -inf
    %475 = vmax.xlane.f32.xlu0 %v474
    %v476 = vpop.xlane.xlu0 %475
    %v477 = vsub.f32 %v445, %v455
    %v478 = vsub.f32 %v446, %v458
    %v479 = vsub.f32 %v447, %v461
    %v480 = vsub.f32 %v448, %v464
    %v481 = vsub.f32 %v449, %v467
    %v482 = vsub.f32 %v450, %v470
    %v483 = vsub.f32 %v451, %v473
    %v484 = vsub.f32 %v452, %v476
    %v485 = vmul.f32 %v477, 1.442695
    %v486 = vpow.pop %v485
    %v487 = vmul.f32 %v478, 1.442695
    %v488 = vpow.pop %v487
    %v489 = vmul.f32 %v479, 1.442695
    %v490 = vpow.pop %v489
    %v491 = vmul.f32 %v480, 1.442695
    %v492 = vpow.pop %v491
    %v493 = vmul.f32 %v481, 1.442695
    %v494 = vpow.pop %v493
    %v495 = vmul.f32 %v482, 1.442695
    %v496 = vpow.pop %v495
    %v497 = vmul.f32 %v483, 1.442695
    %v498 = vpow.pop %v497
    %v499 = vmul.f32 %v484, 1.442695
    %v500 = vpow.pop %v499
    %v501 = vsel %vm66, %v486, 0.0
    %502 = vadd.xlane.f32.xlu0 %v501
    %v503 = vpop.xlane.xlu0 %502
    %v504 = vsel %vm66, %v488, 0.0
    %505 = vadd.xlane.f32.xlu0 %v504
    %v506 = vpop.xlane.xlu0 %505
    %v507 = vsel %vm66, %v490, 0.0
    %508 = vadd.xlane.f32.xlu0 %v507
    %v509 = vpop.xlane.xlu0 %508
    %v510 = vsel %vm66, %v492, 0.0
    %511 = vadd.xlane.f32.xlu0 %v510
    %v512 = vpop.xlane.xlu0 %511
    %v513 = vsel %vm66, %v494, 0.0
    %514 = vadd.xlane.f32.xlu0 %v513
    %v515 = vpop.xlane.xlu0 %514
    %v516 = vsel %vm66, %v496, 0.0
    %517 = vadd.xlane.f32.xlu0 %v516
    %v518 = vpop.xlane.xlu0 %517
    %v519 = vsel %vm66, %v498, 0.0
    %520 = vadd.xlane.f32.xlu0 %v519
    %v521 = vpop.xlane.xlu0 %520
    %v522 = vsel %vm66, %v500, 0.0
    %523 = vadd.xlane.f32.xlu0 %v522
    %v524 = vpop.xlane.xlu0 %523
    %v525 = vrcp.pop %v503
    %v526 = vrcp.pop %v506
    %v527 = vrcp.pop %v509
    %v528 = vrcp.pop %v512
    %v529 = vrcp.pop %v515
    %v530 = vrcp.pop %v518
    %v531 = vrcp.pop %v521
    %v532 = vrcp.pop %v524
    %v533 = vmul.f32 %v486, %v525
    %v534 = vmul.f32 %v488, %v526
    %v535 = vmul.f32 %v490, %v527
    %v536 = vmul.f32 %v492, %v528
    %v537 = vmul.f32 %v494, %v529
    %v538 = vmul.f32 %v496, %v530
    %v539 = vmul.f32 %v498, %v531
    %v540 = vmul.f32 %v500, %v532
    %541 = vrot.lane.b32.xlu0 %v286, 96
    %v542 = vpop.permute.xlu0 %541
    %543 = vrot.lane.b32.xlu0 %v291, 96
    %v544 = vpop.permute.xlu0 %543
    %545 = vrot.lane.b32.xlu0 %v296, 96
    %v546 = vpop.permute.xlu0 %545
    %547 = vrot.lane.b32.xlu0 %v301, 96
    %v548 = vpop.permute.xlu0 %547
    %v554 = vsel %vm66, %v533, 0
    %v557 = vsel %vm66, %v534, 0
    %v560 = vsel %vm66, %v535, 0
    %v563 = vsel %vm66, %v536, 0
    %v566 = vsel %vm66, %v537, 0
    %v569 = vsel %vm66, %v538, 0
    %v572 = vsel %vm66, %v539, 0
    %v575 = vsel %vm66, %v540, 0
    %577 = vmatprep.subr.mxu0 0.0
    %578 = vmatpush1.msra.mxu0 0.0
    %579 = vmatprep.subr.mxu0 0.0
    %580 = vmatpush1.msra.mxu0 0.0
    %581 = vmatprep.subr.mxu0 0.0
    %582 = vmatpush1.msra.mxu0 0.0
    %583 = vmatprep.subr.mxu0 0.0
    %584 = vmatpush1.msra.mxu0 0.0
    %585 = vmatprep.subr.mxu0 0.0
    %586 = vmatpush1.msra.mxu0 0.0
    %587 = vmatprep.subr.mxu0 0.0
    %588 = vmatpush1.msra.mxu0 0.0
    %589 = vmatprep.subr.mxu0 0.0
    %590 = vmatpush1.msra.mxu0 0.0
    %591 = vmatprep.subr.mxu0 0.0
    %592 = vmatpush1.msra.mxu0 0.0
    %593 = vmatprep.subr.mxu0 0.0
    %594 = vmatpush1.msra.mxu0 0.0
    %595 = vmatprep.subr.mxu0 0.0
    %596 = vmatpush1.msra.mxu0 0.0
    %597 = vmatprep.subr.mxu0 0.0
    %598 = vmatpush1.msra.mxu0 0.0
    %599 = vmatprep.subr.mxu0 0.0
    %600 = vmatpush1.msra.mxu0 0.0
    %601 = vmatprep.subr.mxu0 0.0
    %602 = vmatpush1.msra.mxu0 %v548
    %603 = vmatprep.subr.mxu0 0.0
    %604 = vmatpush1.msra.mxu0 %v546
    %605 = vmatprep.subr.mxu0 0.0
    %606 = vmatpush1.msra.mxu0 %v544
    %607 = vmatprep.subr.mxu0 0.0
    %608 = vmatpush1.msra.mxu0 %v542
    %609 = vmatprep.subr.mxu0 0.0
    %610 = vmatpush2.msra.mxu0 0.0
    %611 = vmatprep.subr.mxu0 0.0
    %612 = vmatpush2.msra.mxu0 0.0
    %613 = vmatprep.subr.mxu0 0.0
    %614 = vmatpush2.msra.mxu0 0.0
    %615 = vmatprep.subr.mxu0 0.0
    %616 = vmatpush2.msra.mxu0 0.0
    %617 = vmatprep.subr.mxu0 0.0
    %618 = vmatpush2.msra.mxu0 0.0
    %619 = vmatprep.subr.mxu0 0.0
    %620 = vmatpush2.msra.mxu0 0.0
    %621 = vmatprep.subr.mxu0 0.0
    %622 = vmatpush2.msra.mxu0 0.0
    %623 = vmatprep.subr.mxu0 0.0
    %624 = vmatpush2.msra.mxu0 0.0
    %625 = vmatprep.subr.mxu0 0.0
    %626 = vmatpush2.msra.mxu0 0.0
    %627 = vmatprep.subr.mxu0 0.0
    %628 = vmatpush2.msra.mxu0 0.0
    %629 = vmatprep.subr.mxu0 0.0
    %630 = vmatpush2.msra.mxu0 0.0
    %631 = vmatprep.subr.mxu0 0.0
    %632 = vmatpush2.msra.mxu0 0.0
    %633 = vmatprep.subr.mxu0 0.0
    %634 = vmatpush2.msra.mxu0 0.0
    %635 = vmatprep.subr.mxu0 0.0
    %636 = vmatpush2.msra.mxu0 0.0
    %637 = vmatprep.subr.mxu0 0.0
    %638 = vmatpush2.msra.mxu0 0.0
    %639 = vmatprep.subr.mxu0 0.0
    %640 = vmatpush2.msra.mxu0 0.0
    %641 = vmatprep.mubr.f32.mxu0 0.0
    %642 = vmatmul.mubr.f32.gmra.mxu0 %v554
    %v643 = vpop.f32.mrf.mxu0
    %v644 = vadd.f32 0.0, %v643
    %v645 = vpop.f32.mrf.mxu0
    %646 = vmatprep.mubr.f32.mxu0 0.0
    %647 = vmatmul.mubr.f32.gmra.mxu0 %v557
    %v648 = vpop.f32.mrf.mxu0
    %v649 = vadd.f32 0.0, %v648
    %v650 = vpop.f32.mrf.mxu0
    %651 = vmatprep.mubr.f32.mxu0 0.0
    %652 = vmatmul.mubr.f32.gmra.mxu0 %v560
    %v653 = vpop.f32.mrf.mxu0
    %v654 = vadd.f32 0.0, %v653
    %v655 = vpop.f32.mrf.mxu0
    %656 = vmatprep.mubr.f32.mxu0 0.0
    %657 = vmatmul.mubr.f32.gmra.mxu0 %v563
    %v658 = vpop.f32.mrf.mxu0
    %v659 = vadd.f32 0.0, %v658
    %v660 = vpop.f32.mrf.mxu0
    %661 = vmatprep.mubr.f32.mxu0 0.0
    %662 = vmatmul.mubr.f32.gmra.mxu0 %v566
    %v663 = vpop.f32.mrf.mxu0
    %v664 = vadd.f32 0.0, %v663
    %v665 = vpop.f32.mrf.mxu0
    %666 = vmatprep.mubr.f32.mxu0 0.0
    %667 = vmatmul.mubr.f32.gmra.mxu0 %v569
    %v668 = vpop.f32.mrf.mxu0
    %v669 = vadd.f32 0.0, %v668
    %v670 = vpop.f32.mrf.mxu0
    %671 = vmatprep.mubr.f32.mxu0 0.0
    %672 = vmatmul.mubr.f32.gmra.mxu0 %v572
    %v673 = vpop.f32.mrf.mxu0
    %v674 = vadd.f32 0.0, %v673
    %v675 = vpop.f32.mrf.mxu0
    %676 = vmatprep.mubr.f32.mxu0 0.0
    %677 = vmatmul.mubr.f32.gmra.mxu0 %v575
    %v678 = vpop.f32.mrf.mxu0
    %v679 = vadd.f32 0.0, %v678
    %v680 = vpop.f32.mrf.mxu0
    %681 = vdwg.mxu0
    %v682 = vld [vmem:[#allocation2] sm:$0xff]
    %v683 = vld [vmem:[#allocation2 + $0x8] sm:$0xff]
    %v684 = vld [vmem:[#allocation2 + $0x10] sm:$0xff]
    %v685 = vld [vmem:[#allocation2 + $0x18] sm:$0xff]
    %v686 = vld [vmem:[%s7] sm:$0x1]
    %v688 = vlaneseq
    %v689 = vshrl.u32 %v688, 7
    %v690 = vsub.s32 0, %v689
    %v691 = vrot.slane %v686, %v690
    %v694 = vsel %vm66, %v644, 0
    %v697 = vsel %vm66, %v649, 0
    %v700 = vsel %vm66, %v654, 0
    %v703 = vsel %vm66, %v659, 0
    %v706 = vsel %vm66, %v664, 0
    %v709 = vsel %vm66, %v669, 0
    %v712 = vsel %vm66, %v674, 0
    %v715 = vsel %vm66, %v679, 0
    %717 = vmatprep.subr.mxu0 0.0
    %718 = vmatpush1.msra.mxu0 0.0
    %719 = vmatprep.subr.mxu0 0.0
    %720 = vmatpush1.msra.mxu0 0.0
    %721 = vmatprep.subr.mxu0 0.0
    %722 = vmatpush1.msra.mxu0 0.0
    %723 = vmatprep.subr.mxu0 0.0
    %724 = vmatpush1.msra.mxu0 0.0
    %725 = vmatprep.subr.mxu0 0.0
    %726 = vmatpush1.msra.mxu0 0.0
    %727 = vmatprep.subr.mxu0 0.0
    %728 = vmatpush1.msra.mxu0 0.0
    %729 = vmatprep.subr.mxu0 0.0
    %730 = vmatpush1.msra.mxu0 0.0
    %731 = vmatprep.subr.mxu0 0.0
    %732 = vmatpush1.msra.mxu0 0.0
    %733 = vmatprep.subr.mxu0 0.0
    %734 = vmatpush1.msra.mxu0 0.0
    %735 = vmatprep.subr.mxu0 0.0
    %736 = vmatpush1.msra.mxu0 0.0
    %737 = vmatprep.subr.mxu0 0.0
    %738 = vmatpush1.msra.mxu0 0.0
    %739 = vmatprep.subr.mxu0 0.0
    %740 = vmatpush1.msra.mxu0 0.0
    %741 = vmatprep.subr.mxu0 0.0
    %742 = vmatpush1.msra.mxu0 %v685
    %743 = vmatprep.subr.mxu0 0.0
    %744 = vmatpush1.msra.mxu0 %v684
    %745 = vmatprep.subr.mxu0 0.0
    %746 = vmatpush1.msra.mxu0 %v683
    %747 = vmatprep.subr.mxu0 0.0
    %748 = vmatpush1.msra.mxu0 %v682
    %749 = vmatprep.subr.mxu0 0.0
    %750 = vmatpush2.msra.mxu0 0.0
    %751 = vmatprep.subr.mxu0 0.0
    %752 = vmatpush2.msra.mxu0 0.0
    %753 = vmatprep.subr.mxu0 0.0
    %754 = vmatpush2.msra.mxu0 0.0
    %755 = vmatprep.subr.mxu0 0.0
    %756 = vmatpush2.msra.mxu0 0.0
    %757 = vmatprep.subr.mxu0 0.0
    %758 = vmatpush2.msra.mxu0 0.0
    %759 = vmatprep.subr.mxu0 0.0
    %760 = vmatpush2.msra.mxu0 0.0
    %761 = vmatprep.subr.mxu0 0.0
    %762 = vmatpush2.msra.mxu0 0.0
    %763 = vmatprep.subr.mxu0 0.0
    %764 = vmatpush2.msra.mxu0 0.0
    %765 = vmatprep.subr.mxu0 0.0
    %766 = vmatpush2.msra.mxu0 0.0
    %767 = vmatprep.subr.mxu0 0.0
    %768 = vmatpush2.msra.mxu0 0.0
    %769 = vmatprep.subr.mxu0 0.0
    %770 = vmatpush2.msra.mxu0 0.0
    %771 = vmatprep.subr.mxu0 0.0
    %772 = vmatpush2.msra.mxu0 0.0
    %773 = vmatprep.subr.mxu0 0.0
    %774 = vmatpush2.msra.mxu0 0.0
    %775 = vmatprep.subr.mxu0 0.0
    %776 = vmatpush2.msra.mxu0 0.0
    %777 = vmatprep.subr.mxu0 0.0
    %778 = vmatpush2.msra.mxu0 0.0
    %779 = vmatprep.subr.mxu0 0.0
    %780 = vmatpush2.msra.mxu0 0.0
    %781 = vmatprep.mubr.f32.mxu0 0.0
    %782 = vmatmul.mubr.f32.gmra.mxu0 %v694
    %v783 = vpop.f32.mrf.mxu0
    %v784 = vadd.f32 %v691, %v783
    %v785 = vpop.f32.mrf.mxu0
    %786 = vmatprep.mubr.f32.mxu0 0.0
    %787 = vmatmul.mubr.f32.gmra.mxu0 %v697
    %v788 = vpop.f32.mrf.mxu0
    %v789 = vadd.f32 %v691, %v788
    %v790 = vpop.f32.mrf.mxu0
    %791 = vmatprep.mubr.f32.mxu0 0.0
    %792 = vmatmul.mubr.f32.gmra.mxu0 %v700
    %v793 = vpop.f32.mrf.mxu0
    %v794 = vadd.f32 %v691, %v793
    %v795 = vpop.f32.mrf.mxu0
    %796 = vmatprep.mubr.f32.mxu0 0.0
    %797 = vmatmul.mubr.f32.gmra.mxu0 %v703
    %v798 = vpop.f32.mrf.mxu0
    %v799 = vadd.f32 %v691, %v798
    %v800 = vpop.f32.mrf.mxu0
    %801 = vmatprep.mubr.f32.mxu0 0.0
    %802 = vmatmul.mubr.f32.gmra.mxu0 %v706
    %v803 = vpop.f32.mrf.mxu0
    %v804 = vadd.f32 %v691, %v803
    %v805 = vpop.f32.mrf.mxu0
    %806 = vmatprep.mubr.f32.mxu0 0.0
    %807 = vmatmul.mubr.f32.gmra.mxu0 %v709
    %v808 = vpop.f32.mrf.mxu0
    %v809 = vadd.f32 %v691, %v808
    %v810 = vpop.f32.mrf.mxu0
    %811 = vmatprep.mubr.f32.mxu0 0.0
    %812 = vmatmul.mubr.f32.gmra.mxu0 %v712
    %v813 = vpop.f32.mrf.mxu0
    %v814 = vadd.f32 %v691, %v813
    %v815 = vpop.f32.mrf.mxu0
    %816 = vmatprep.mubr.f32.mxu0 0.0
    %817 = vmatmul.mubr.f32.gmra.mxu0 %v715
    %v818 = vpop.f32.mrf.mxu0
    %v819 = vadd.f32 %v691, %v818
    %v820 = vpop.f32.mrf.mxu0
    %821 = vdwg.mxu0
    %822 = vst.msk [vmem:[%s8] sm:$0xff] %vm66, %v784
    %823 = vst.msk [vmem:[%s8 + $0x8] sm:$0xff] %vm66, %v789
    %824 = vst.msk [vmem:[%s8 + $0x10] sm:$0xff] %vm66, %v794
    %825 = vst.msk [vmem:[%s8 + $0x18] sm:$0xff] %vm66, %v799
    %826 = vst.msk [vmem:[%s8 + $0x20] sm:$0xff] %vm66, %v804
    %827 = vst.msk [vmem:[%s8 + $0x28] sm:$0xff] %vm66, %v809
    %828 = vst.msk [vmem:[%s8 + $0x30] sm:$0xff] %vm66, %v814
    %829 = vst.msk [vmem:[%s8 + $0x38] sm:$0xff] %vm66, %v819
    // Predicated region
    $region38: #{tpu_custom_call.1} parent=1 // pred_check
      _
    $region39: #{tpu_custom_call.1} parent=1 // pred_check_branch
      %831 = sbr.rel (0) target = $region41
    $region40: #{tpu_custom_call.1} parent=1 // pred_region
      _
    $region41: #{tpu_custom_call.1} parent=1 // pred_fallthru
      _
    // Predicated region
    $region42: #{tpu_custom_call.1} parent=1 // pred_check
      _
    $region43: #{tpu_custom_call.1} parent=1 // pred_check_branch
      %833 = sbr.rel (0) target = $region45
    $region44: #{tpu_custom_call.1} parent=1 // pred_region
      _
    $region45: #{tpu_custom_call.1} parent=1 // pred_fallthru
      _
    %834 = vsyncpa [#allocation3], 1

</llo_original>
